<compile_context>
chip_gen: v5e
topology: v5e:2x2
jax: 0.10.0
libtpu: 0.0.40
codegen_flags: <defaults>
</compile_context>

<pallas_src>
import functools
import math

import jax
import jax.numpy as jnp
from jax.experimental import pallas as pl
from jax.experimental.pallas import tpu as pltpu


def _round_up(x, m):
    return ((x + m - 1) // m) * m


def _mlp3_kernel(x_ref, w1_ref, w2_ref, w3_ref, b1_ref, b2_ref, b3_ref, out_ref):
    """out = relu(relu(x@W1+b1) @ W2c + b2c) @ W3p + b3p (W3p lane-padded)."""
    x = x_ref[...]                                    # (tile_b, n_obs)  bf16
    h = jnp.dot(x, w1_ref[...], preferred_element_type=jnp.float32) + b1_ref[...]
    h = jnp.maximum(h, 0.0)
    h = jnp.dot(h.astype(w2_ref.dtype), w2_ref[...],
                preferred_element_type=jnp.float32) + b2_ref[...]
    h = jnp.maximum(h, 0.0)
    out = jnp.dot(h.astype(w3_ref.dtype), w3_ref[...],
                  preferred_element_type=jnp.float32) + b3_ref[...]
    out_ref[...] = out.astype(out_ref.dtype)          # bf16 lane-dense store


def _fold_hidden_stack(params, n_neurons):
    """Fold layer2's activation-free Linear stack into a single (W, b) in f32."""
    hidden = params[1:-1]
    if not hidden:
        return (jnp.eye(n_neurons, dtype=jnp.float32),
                jnp.zeros((n_neurons,), jnp.float32))
    w_c, b_c = hidden[0]
    w_c = w_c.astype(jnp.float32)
    b_c = b_c.astype(jnp.float32)
    for (w, b) in hidden[1:]:
        b_c = b_c @ w.astype(jnp.float32) + b.astype(jnp.float32)
        w_c = w_c @ w.astype(jnp.float32)
    return w_c, b_c


def dqn_forward_padded(x, params, *, tile_b=2048, compute_dtype=jnp.bfloat16,
                       out_dtype=jnp.bfloat16, two_core_min_batch=4096):
    """Hot-path entry point.

    x: (batch, n_observations) f32.  params: list of (W, b), W is (in, out).
    Returns (out_padded, n_actions) where out_padded is
    (round_up(batch, tile), round_up(n_actions, 128)) in `out_dtype`.
    Consume it fused (mask / argmax / slice inside the caller's jit) to avoid
    an extra HBM pass over the padded result.
    """
    batch, n_obs = x.shape
    n_neurons = params[0][0].shape[1]
    n_actions = params[-1][0].shape[1]
    n_act_pad = _round_up(n_actions, 128)        # lane-dense (unmasked) stores

    # --- wrapper-time algebra: fold hidden stack, pad layer3, prep biases ----
    w1, b1 = params[0]
    w2c, b2c = _fold_hidden_stack(params, n_neurons)
    w3, b3 = params[-1]

    w3p = jnp.zeros((n_neurons, n_act_pad), jnp.float32)
    w3p = w3p.at[:, :n_actions].set(w3.astype(jnp.float32))
    b1p = b1.astype(jnp.float32).reshape(1, n_neurons)
    b2p = b2c.reshape(1, n_neurons)
    b3p = jnp.zeros((1, n_act_pad), jnp.float32).at[0, :n_actions].set(
        b3.astype(jnp.float32))

    # bf16 weights / activations on the MXU, f32 accumulation.
    w1c = w1.astype(compute_dtype)
    w2cc = w2c.astype(compute_dtype)
    w3c = w3p.astype(compute_dtype)
    xc = x.astype(compute_dtype)

    # --- batch tiling ---------------------------------------------------------
    if batch <= tile_b:
        if batch >= two_core_min_batch:
            # Ensure >= 2 grid steps so "parallel" can use both v7x TensorCores.
            tile = _round_up(pl.cdiv(batch, 2), 8)
        else:
            tile = batch                       # single block == whole array
    else:
        tile = tile_b                          # multiple of 8 by construction
    batch_pad = _round_up(batch, tile)
    if batch_pad != batch:
        xc = jnp.pad(xc, ((0, batch_pad - batch), (0, 0)))
    grid = (batch_pad // tile,)

    # --- cost / VMEM hints ----------------------------------------------------
    cd_bytes = jnp.dtype(compute_dtype).itemsize
    od_bytes = jnp.dtype(out_dtype).itemsize
    weight_bytes = (w1c.size + w2cc.size + w3c.size) * cd_bytes \
        + (b1p.size + b2p.size + b3p.size) * 4
    bytes_in = xc.size * cd_bytes + weight_bytes
    bytes_out = batch_pad * n_act_pad * od_bytes
    cost = pl.CostEstimate(
        flops=2 * batch_pad * (n_obs * n_neurons + n_neurons * n_neurons
                               + n_neurons * n_act_pad),
        transcendentals=0,
        bytes_accessed=int(bytes_in + bytes_out),
    )
    # Double-buffered x / out tiles + single-buffered weights + headroom.
    vmem_need = (2 * tile * n_obs * cd_bytes + 2 * tile * n_act_pad * od_bytes
                 + weight_bytes + (2 << 20))
    vmem_limit = int(min(max(vmem_need, 32 << 20), 60 << 20))

    resident = dict(pipeline_mode=pl.Buffered(buffer_count=1))  # no 2nd buffer

    out = pl.pallas_call(
        _mlp3_kernel,
        out_shape=jax.ShapeDtypeStruct((batch_pad, n_act_pad), out_dtype),
        grid=grid,
        in_specs=[
            pl.BlockSpec((tile, n_obs), lambda i: (i, 0)),                     # x tile
            pl.BlockSpec((n_obs, n_neurons), lambda i: (0, 0), **resident),    # W1
            pl.BlockSpec((n_neurons, n_neurons), lambda i: (0, 0), **resident),  # folded W2
            pl.BlockSpec((n_neurons, n_act_pad), lambda i: (0, 0), **resident),  # padded W3
            pl.BlockSpec((1, n_neurons), lambda i: (0, 0), **resident),        # b1
            pl.BlockSpec((1, n_neurons), lambda i: (0, 0), **resident),        # b2c
            pl.BlockSpec((1, n_act_pad), lambda i: (0, 0), **resident),        # b3 (padded)
        ],
        out_specs=pl.BlockSpec((tile, n_act_pad), lambda i: (i, 0)),
        compiler_params=pltpu.CompilerParams(
            dimension_semantics=("parallel",),      # batch sharded on v7x 2 TCs
            vmem_limit_bytes=vmem_limit),
        cost_estimate=cost,
    )(xc, w1c, w2cc, w3c, b1p, b2p, b3p)
    return out, n_actions


def dqn_forward(x, params, **kwargs):
    """Convenience wrapper: unpadded f32 Q-values, shape (batch, n_actions).

    For maximum throughput, prefer dqn_forward_padded and fuse the slice /
    argmax into the consumer's jit instead of materializing this extra pass.
    """
    out_pad, n_actions = dqn_forward_padded(x, params, **kwargs)
    return out_pad[: x.shape[0], :n_actions].astype(jnp.float32)


def init_params(key, n_observations, n_actions, n_neurons, n_layers):
    """Deterministic init mimicking torch.nn.Linear (uniform(+-1/sqrt(fan_in)))."""
    dims = [(n_observations, n_neurons)]
    dims += [(n_neurons, n_neurons)] * n_layers
    dims += [(n_neurons, n_actions)]
    params = []
    for (fan_in, fan_out) in dims:
        key, kw, kb = jax.random.split(key, 3)
        bound = 1.0 / math.sqrt(float(fan_in))
        w = jax.random.uniform(kw, (fan_in, fan_out), jnp.float32, -bound, bound)
        b = jax.random.uniform(kb, (fan_out,), jnp.float32, -bound, bound)
        params.append((w, b))
    return params


def reference_forward(x, params):
    """Pure-JAX f32 reference with the exact torch-module semantics."""
    w, b = params[0]
    h = jnp.maximum(x @ w + b, 0.0)
    for (w, b) in params[1:-1]:
        h = h @ w + b              # Sequential of Linears: no activation between
    h = jnp.maximum(h, 0.0)        # single ReLU after the whole stack
    w, b = params[-1]
    return h @ w + b


def reference_forward_bf16_folded(x, params):
    """Reference mirroring the kernel's folded/bf16 numerics (tight check)."""
    n_neurons = params[0][0].shape[1]
    w1, b1 = params[0]
    w2c, b2c = _fold_hidden_stack(params, n_neurons)
    w3, b3 = params[-1]
    bf = jnp.bfloat16
    h = jnp.dot(x.astype(bf), w1.astype(bf), preferred_element_type=jnp.float32) + b1
    h = jnp.maximum(h, 0.0)
    h = jnp.dot(h.astype(bf), w2c.astype(bf), preferred_element_type=jnp.float32) + b2c
    h = jnp.maximum(h, 0.0)
    out = jnp.dot(h.astype(bf), w3.astype(bf), preferred_element_type=jnp.float32) + b3
    return out.astype(bf).astype(jnp.float32)   # mirror the kernel's bf16 store


if __name__ == "__main__":
    # Lunar-lander-like sizes: 8 observations, 4 actions, 32-neuron hidden
    # layers, 2 hidden Linear layers in the Sequential, batch of 2.
    n_observations, n_actions, n_neurons, n_layers, batch = 8, 4, 32, 2, 2

    key = jax.random.PRNGKey(0)
    key, kx = jax.random.split(key)
    x = jax.random.normal(kx, (batch, n_observations), jnp.float32)
    params = init_params(key, n_observations, n_actions, n_neurons, n_layers)

    out = jax.block_until_ready(dqn_forward(x, params))
    assert out.shape == (batch, n_actions)

    # Tight check vs. a reference mimicking the kernel's folded/bf16 math.
    ref_bf16 = reference_forward_bf16_folded(x, params)
    assert jnp.allclose(out, ref_bf16, atol=1e-2, rtol=1e-2), \
        "mismatch vs bf16/folded reference"

    # Relaxed check vs. the exact f32 torch semantics (bf16 ~1e-2 rel error).
    ref_f32 = reference_forward(x, params)
    assert jnp.allclose(out, ref_f32, atol=5e-2, rtol=5e-2), \
        "mismatch vs f32 reference"

    print("KERNEL_OK")
</pallas_src>

<mosaic_0001>
module attributes {stable_mosaic.version = 11 : i64} {
  func.func @_mlp3_kernel(%arg0: i32, %arg1: memref<2x8xbf16, #tpu.memory_space<vmem>>, %arg2: memref<8x32xbf16, #tpu.memory_space<vmem>>, %arg3: memref<32x32xbf16, #tpu.memory_space<vmem>>, %arg4: memref<32x128xbf16, #tpu.memory_space<vmem>>, %arg5: memref<1x32xf32, #tpu.memory_space<vmem>>, %arg6: memref<1x32xf32, #tpu.memory_space<vmem>>, %arg7: memref<1x128xf32, #tpu.memory_space<vmem>>, %arg8: memref<2x128xbf16, #tpu.memory_space<vmem>>) attributes {dimension_semantics = [#tpu.dimension_semantics<parallel>], iteration_bounds = array<i64: 1>, scalar_prefetch = 0 : i64, scratch_operands = 0 : i64, tpu.core_type = #tpu.core_type<tc>, window_params = [{transform_indices = @transform_0, window_bounds = array<i64: 2, 8>}, {pipeline_mode = #tpu.pipeline_mode<synchronous>, transform_indices = @transform_1, window_bounds = array<i64: 8, 32>}, {pipeline_mode = #tpu.pipeline_mode<synchronous>, transform_indices = @transform_2, window_bounds = array<i64: 32, 32>}, {pipeline_mode = #tpu.pipeline_mode<synchronous>, transform_indices = @transform_3, window_bounds = array<i64: 32, 128>}, {pipeline_mode = #tpu.pipeline_mode<synchronous>, transform_indices = @transform_4, window_bounds = array<i64: 1, 32>}, {pipeline_mode = #tpu.pipeline_mode<synchronous>, transform_indices = @transform_5, window_bounds = array<i64: 1, 32>}, {pipeline_mode = #tpu.pipeline_mode<synchronous>, transform_indices = @transform_6, window_bounds = array<i64: 1, 128>}, {transform_indices = @transform_7, window_bounds = array<i64: 2, 128>}]} {
    %c0 = arith.constant 0 : index
    %c0_0 = arith.constant 0 : index
    %0 = vector.load %arg1[%c0, %c0_0] : memref<2x8xbf16, #tpu.memory_space<vmem>>, vector<2x8xbf16>
    %c0_1 = arith.constant 0 : index
    %c0_2 = arith.constant 0 : index
    %1 = vector.load %arg2[%c0_1, %c0_2] : memref<8x32xbf16, #tpu.memory_space<vmem>>, vector<8x32xbf16>
    %cst = arith.constant dense<0.000000e+00> : vector<2x32xf32>
    %2 = tpu.matmul %0, %1, %cst {dimension_numbers = #tpu.dot_dimension_numbers<[1], [0], [0], [1], [0, 0, 1, 1], [], []>} : vector<2x8xbf16>, vector<8x32xbf16>, vector<2x32xf32> -> vector<2x32xf32>
    %c0_3 = arith.constant 0 : index
    %c0_4 = arith.constant 0 : index
    %3 = vector.load %arg5[%c0_3, %c0_4] : memref<1x32xf32, #tpu.memory_space<vmem>>, vector<1x32xf32>
    %4 = vector.broadcast %3 : vector<1x32xf32> to vector<2x32xf32>
    %5 = arith.addf %2, %4 : vector<2x32xf32>
    %cst_5 = arith.constant 0.000000e+00 : f32
    %6 = vector.broadcast %cst_5 : f32 to vector<2x32xf32>
    %7 = arith.maximumf %5, %6 : vector<2x32xf32>
    %8 = arith.truncf %7 : vector<2x32xf32> to vector<2x32xbf16>
    %c0_6 = arith.constant 0 : index
    %c0_7 = arith.constant 0 : index
    %9 = vector.load %arg3[%c0_6, %c0_7] : memref<32x32xbf16, #tpu.memory_space<vmem>>, vector<32x32xbf16>
    %cst_8 = arith.constant dense<0.000000e+00> : vector<2x32xf32>
    %10 = tpu.matmul %8, %9, %cst_8 {dimension_numbers = #tpu.dot_dimension_numbers<[1], [0], [0], [1], [0, 0, 1, 1], [], []>} : vector<2x32xbf16>, vector<32x32xbf16>, vector<2x32xf32> -> vector<2x32xf32>
    %c0_9 = arith.constant 0 : index
    %c0_10 = arith.constant 0 : index
    %11 = vector.load %arg6[%c0_9, %c0_10] : memref<1x32xf32, #tpu.memory_space<vmem>>, vector<1x32xf32>
    %12 = vector.broadcast %11 : vector<1x32xf32> to vector<2x32xf32>
    %13 = arith.addf %10, %12 : vector<2x32xf32>
    %cst_11 = arith.constant 0.000000e+00 : f32
    %14 = vector.broadcast %cst_11 : f32 to vector<2x32xf32>
    %15 = arith.maximumf %13, %14 : vector<2x32xf32>
    %16 = arith.truncf %15 : vector<2x32xf32> to vector<2x32xbf16>
    %c0_12 = arith.constant 0 : index
    %c0_13 = arith.constant 0 : index
    %17 = vector.load %arg4[%c0_12, %c0_13] : memref<32x128xbf16, #tpu.memory_space<vmem>>, vector<32x128xbf16>
    %cst_14 = arith.constant dense<0.000000e+00> : vector<2x128xf32>
    %18 = tpu.matmul %16, %17, %cst_14 {dimension_numbers = #tpu.dot_dimension_numbers<[1], [0], [0], [1], [0, 0, 1, 1], [], []>} : vector<2x32xbf16>, vector<32x128xbf16>, vector<2x128xf32> -> vector<2x128xf32>
    %c0_15 = arith.constant 0 : index
    %c0_16 = arith.constant 0 : index
    %19 = vector.load %arg7[%c0_15, %c0_16] : memref<1x128xf32, #tpu.memory_space<vmem>>, vector<1x128xf32>
    %20 = vector.broadcast %19 : vector<1x128xf32> to vector<2x128xf32>
    %21 = arith.addf %18, %20 : vector<2x128xf32>
    %22 = arith.truncf %21 : vector<2x128xf32> to vector<2x128xbf16>
    %c0_17 = arith.constant 0 : index
    %c0_18 = arith.constant 0 : index
    %23 = vector.load %arg8[%c0_17, %c0_18] : memref<2x128xbf16, #tpu.memory_space<vmem>>, vector<2x128xbf16>
    tpu.vector_store %arg8[%c0_17, %c0_18], %22 {strides = array<i32>} : memref<2x128xbf16, #tpu.memory_space<vmem>>, vector<2x128xbf16>,
    return
  }
  func.func @transform_0(%arg0: i32) -> (i32, i32) {
    %c0_i32 = arith.constant 0 : i32
    %c0_i32_0 = arith.constant 0 : i32
    return %arg0, %c0_i32 : i32, i32
  }
  func.func @transform_1(%arg0: i32) -> (i32, i32) {
    %c0_i32 = arith.constant 0 : i32
    %c0_i32_0 = arith.constant 0 : i32
    %c0_i32_1 = arith.constant 0 : i32
    return %c0_i32, %c0_i32_0 : i32, i32
  }
  func.func @transform_2(%arg0: i32) -> (i32, i32) {
    %c0_i32 = arith.constant 0 : i32
    %c0_i32_0 = arith.constant 0 : i32
    %c0_i32_1 = arith.constant 0 : i32
    return %c0_i32, %c0_i32_0 : i32, i32
  }
  func.func @transform_3(%arg0: i32) -> (i32, i32) {
    %c0_i32 = arith.constant 0 : i32
    %c0_i32_0 = arith.constant 0 : i32
    %c0_i32_1 = arith.constant 0 : i32
    return %c0_i32, %c0_i32_0 : i32, i32
  }
  func.func @transform_4(%arg0: i32) -> (i32, i32) {
    %c0_i32 = arith.constant 0 : i32
    %c0_i32_0 = arith.constant 0 : i32
    %c0_i32_1 = arith.constant 0 : i32
    return %c0_i32, %c0_i32_0 : i32, i32
  }
  func.func @transform_5(%arg0: i32) -> (i32, i32) {
    %c0_i32 = arith.constant 0 : i32
    %c0_i32_0 = arith.constant 0 : i32
    %c0_i32_1 = arith.constant 0 : i32
    return %c0_i32, %c0_i32_0 : i32, i32
  }
  func.func @transform_6(%arg0: i32) -> (i32, i32) {
    %c0_i32 = arith.constant 0 : i32
    %c0_i32_0 = arith.constant 0 : i32
    %c0_i32_1 = arith.constant 0 : i32
    return %c0_i32, %c0_i32_0 : i32, i32
  }
  func.func @transform_7(%arg0: i32) -> (i32, i32) {
    %c0_i32 = arith.constant 0 : i32
    %c0_i32_0 = arith.constant 0 : i32
    return %arg0, %c0_i32 : i32, i32
  }
}

</mosaic_0001>

<llo_original>
// kernel: tpu_custom_call.1
$region0: #{tpu_custom_call.1}
  #allocation0 [shape = 'u32[]', space=smem, size = 0x4, offset = 0x4, fixed_abs, tag = 'smem constant byte address 0x4 - core index']
  #allocation1 [shape = 'u32[72,128]{1,0:T(1,128)}', space=vmem, size = 0x9000, scoped, tag = 'internal scratch']
  %s0 = inlined_call_operand.hbm [shape: bf16[2,8], index: 0, kind: input, shape index: {}]
  %s1 = inlined_call_operand.hbm [shape: bf16[8,32], index: 1, kind: input, shape index: {}]
  %s2 = inlined_call_operand.hbm [shape: bf16[32,32], index: 2, kind: input, shape index: {}]
  %s3 = inlined_call_operand.hbm [shape: bf16[32,128], index: 3, kind: input, shape index: {}]
  %s4 = inlined_call_operand.vmem [shape: f32[1,32], index: 4, kind: input, shape index: {}]
  %s5 = inlined_call_operand.vmem [shape: f32[1,32], index: 5, kind: input, shape index: {}]
  %s6 = inlined_call_operand.vmem [shape: f32[1,128], index: 6, kind: input, shape index: {}]
  %s7 = inlined_call_operand.hbm [shape: bf16[2,128], index: 7, kind: output, shape index: {}]
  %s8 = sld [smem:[#allocation0]]
  $region54: #{tpu_custom_call.1} parent=0
    _
  %s10 = ssub.s32 1, %s8
  %s11 = scalar_select 0, %s10, %s8
  $region1: #{tpu_custom_call.1} parent=0
    #allocation2 [shape = 'u8[512]{0}', space=vmem, size = 0x400, scoped, tag = 'input window, operand 0, single buffered']
    #allocation3 [shape = 's32[1]{0}', space=sflag, size = 0x4, scoped, tag = 'scoped memory for tpu_custom_call.1']
    #allocation4 [shape = 's32[1]{0}', space=sflag, size = 0x4, scoped, tag = 'scoped memory for tpu_custom_call.1']
    #allocation5 [shape = 'u8[2048]{0}', space=vmem, size = 0x800, scoped, tag = 'input window, operand 1, single buffered']
    #allocation6 [shape = 's32[1]{0}', space=sflag, size = 0x4, scoped, tag = 'scoped memory for tpu_custom_call.1']
    #allocation7 [shape = 'u8[8192]{0}', space=vmem, size = 0x2000, scoped, tag = 'input window, operand 2, single buffered']
    #allocation8 [shape = 'u8[8192]{0}', space=vmem, size = 0x2000, scoped, tag = 'input window, operand 3, single buffered']
    #allocation9 [shape = 's32[1]{0}', space=sflag, size = 0x4, scoped, tag = 'scoped memory for tpu_custom_call.1']
    #allocation10 [shape = 'u8[512]{0}', space=vmem, size = 0x400, scoped, tag = 'output window, operand 0, single buffered']
    %12 = vsyncpa [#allocation3], 0
    %13 = vsyncpa [#allocation6], 0
    %14 = vsyncpa [#allocation9], 0
    %15 = vsyncpa [#allocation4], 0
    // Predicated region
    $region2: #{tpu_custom_call.1} parent=1 // pred_check
      _
    $region3: #{tpu_custom_call.1} parent=1 // pred_check_branch
      %17 = sbr.rel (0) target = $region5
    $region4: #{tpu_custom_call.1} parent=1 // pred_region
      %19 = vsyncadd [#allocation3], 0
      %s21 = sshll.u32 %s0, 4
      %s22 = int_to_ptr.hbm [resolvable:$true] %s21
      %s23 = sshll.u32 [#allocation2], 4
      %s24 = int_to_ptr.vmem [resolvable:$true] %s23
      %26 = dma.hbm_to_vmem [thread:$0]  %s22, 16, %s24, [#allocation3]
    $region5: #{tpu_custom_call.1} parent=1 // pred_fallthru
      _
    // Predicated region
    $region6: #{tpu_custom_call.1} parent=1 // pred_check
      _
    $region7: #{tpu_custom_call.1} parent=1 // pred_check_branch
      %28 = sbr.rel (0) target = $region9
    $region8: #{tpu_custom_call.1} parent=1 // pred_region
      %30 = vsyncadd [#allocation6], 0
      %s32 = sshll.u32 %s1, 4
      %s33 = int_to_ptr.hbm [resolvable:$true] %s32
      %s34 = sshll.u32 [#allocation5], 4
      %s35 = int_to_ptr.vmem [resolvable:$true] %s34
      %37 = dma.hbm_to_vmem [thread:$0]  %s33, 64, %s35, [#allocation6]
    $region9: #{tpu_custom_call.1} parent=1 // pred_fallthru
      _
    // Predicated region
    $region10: #{tpu_custom_call.1} parent=1 // pred_check
      _
    $region11: #{tpu_custom_call.1} parent=1 // pred_check_branch
      %39 = sbr.rel (0) target = $region13
    $region12: #{tpu_custom_call.1} parent=1 // pred_region
      %41 = vsyncadd [#allocation6], 0
      %s42 = sshll.u32 %s2, 4
      %s43 = int_to_ptr.hbm [resolvable:$true] %s42
      %s44 = sshll.u32 [#allocation7], 4
      %s45 = int_to_ptr.vmem [resolvable:$true] %s44
      %50 = dma.hbm_to_vmem [thread:$0]  %s43, 256, %s45, [#allocation6], 64, 64, 4
    $region13: #{tpu_custom_call.1} parent=1 // pred_fallthru
      _
    // Predicated region
    $region14: #{tpu_custom_call.1} parent=1 // pred_check
      _
    $region15: #{tpu_custom_call.1} parent=1 // pred_check_branch
      %52 = sbr.rel (0) target = $region17
    $region16: #{tpu_custom_call.1} parent=1 // pred_region
      %54 = vsyncadd [#allocation9], 0
      %s55 = sshll.u32 %s3, 4
      %s56 = int_to_ptr.hbm [resolvable:$true] %s55
      %s57 = sshll.u32 [#allocation8], 4
      %s58 = int_to_ptr.vmem [resolvable:$true] %s57
      %63 = dma.hbm_to_vmem [thread:$0]  %s56, 256, %s58, [#allocation9], 64, 64, 4
    $region17: #{tpu_custom_call.1} parent=1 // pred_fallthru
      _
    // Predicated region
    $region18: #{tpu_custom_call.1} parent=1 // pred_check
      _
    $region19: #{tpu_custom_call.1} parent=1 // pred_check_branch
      %65 = sbr.rel (0) target = $region21
    $region20: #{tpu_custom_call.1} parent=1 // pred_region
      _
    $region21: #{tpu_custom_call.1} parent=1 // pred_fallthru
      _
    // Predicated region
    $region22: #{tpu_custom_call.1} parent=1 // pred_check
      _
    $region23: #{tpu_custom_call.1} parent=1 // pred_check_branch
      %67 = sbr.rel (0) target = $region25
    $region24: #{tpu_custom_call.1} parent=1 // pred_region
      _
    $region25: #{tpu_custom_call.1} parent=1 // pred_fallthru
      _
    // Predicated region
    $region26: #{tpu_custom_call.1} parent=1 // pred_check
      _
    $region27: #{tpu_custom_call.1} parent=1 // pred_check_branch
      %69 = sbr.rel (0) target = $region29
    $region28: #{tpu_custom_call.1} parent=1 // pred_region
      _
    $region29: #{tpu_custom_call.1} parent=1 // pred_fallthru
      _
    // Predicated region
    $region30: #{tpu_custom_call.1} parent=1 // pred_check
      _
    $region31: #{tpu_custom_call.1} parent=1 // pred_check_branch
      %71 = sbr.rel (0) target = $region33
    $region32: #{tpu_custom_call.1} parent=1 // pred_region
      %73 = dma.done [#allocation3], 16
    $region33: #{tpu_custom_call.1} parent=1 // pred_fallthru
      _
    // Predicated region
    $region34: #{tpu_custom_call.1} parent=1 // pred_check
      _
    $region35: #{tpu_custom_call.1} parent=1 // pred_check_branch
      %75 = sbr.rel (0) target = $region37
    $region36: #{tpu_custom_call.1} parent=1 // pred_region
      %77 = dma.done [#allocation6], 64
    $region37: #{tpu_custom_call.1} parent=1 // pred_fallthru
      _
    // Predicated region
    $region38: #{tpu_custom_call.1} parent=1 // pred_check
      _
    $region39: #{tpu_custom_call.1} parent=1 // pred_check_branch
      %79 = sbr.rel (0) target = $region41
    $region40: #{tpu_custom_call.1} parent=1 // pred_region
      %81 = dma.done [#allocation6], 256
    $region41: #{tpu_custom_call.1} parent=1 // pred_fallthru
      _
    // Predicated region
    $region42: #{tpu_custom_call.1} parent=1 // pred_check
      _
    $region43: #{tpu_custom_call.1} parent=1 // pred_check_branch
      %83 = sbr.rel (0) target = $region45
    $region44: #{tpu_custom_call.1} parent=1 // pred_region
      %85 = dma.done [#allocation9], 256
    $region45: #{tpu_custom_call.1} parent=1 // pred_fallthru
      _
    %v87 = vld [vmem:[#allocation2] sm:$0x1]
    %v88 = vld [vmem:[#allocation5] sm:$0xf]
    %v89 = vld [vmem:[%s4] sm:$0x1]
    %v91 = vperm.slane %v89, 0
    %vm93 = vcmask 64512
    %v95 = vsel %vm93, %v87, 0
    %vm97 = vcmask 1043456
    %v99 = vsel %vm97, %v88, 0
    %101 = vmatpush.bf16.msra.mxu0 0
    %102 = vmatpush.bf16.msra.mxu0 0
    %103 = vmatpush.bf16.msra.mxu0 0
    %104 = vmatpush.bf16.msra.mxu0 0
    %105 = vmatpush.bf16.msra.mxu0 0
    %106 = vmatpush.bf16.msra.mxu0 0
    %107 = vmatpush.bf16.msra.mxu0 0
    %108 = vmatpush.bf16.msra.mxu0 %v99
    %109 = vmatmul.bf16.gmra.mxu0 %v95
    %v110 = vpop.f32.mrf.mxu0
    %v111 = vadd.f32 %v91, %v110
    %v112 = vpop.f32.mrf.mxu0
    %113 = vdwg.mxu0
    %v114 = vmax.f32 %v111, 0.0
    %v115 = vpack.c.bf16 %v114, %v114
    %v116 = vld [vmem:[#allocation7] sm:$0xf]
    %v117 = vld [vmem:[#allocation7 + $0x4] sm:$0xf]
    %v118 = vld [vmem:[#allocation7 + $0x8] sm:$0xf]
    %v119 = vld [vmem:[#allocation7 + $0xc] sm:$0xf]
    %v120 = vld [vmem:[%s5] sm:$0x1]
    %v122 = vperm.slane %v120, 0
    %v128 = vunpack.c.l.b16 %v116
    %v129 = vunpack.c.l.b16 %v117
    %v130 = vunpack.c.l.b16 %v118
    %v131 = vunpack.c.l.b16 %v119
    %v132 = vpack.c.b16 %v129, %v128
    %v133 = vpack.c.b16 %v131, %v130
    %vm136 = vcmask 261120
    %v138 = vsel %vm136, %v115, 0
    %140 = vmatpush.bf16.msra.mxu0 0
    %141 = vmatpush.bf16.msra.mxu0 0
    %142 = vmatpush.bf16.msra.mxu0 0
    %143 = vmatpush.bf16.msra.mxu0 0
    %144 = vmatpush.bf16.msra.mxu0 0
    %145 = vmatpush.bf16.msra.mxu0 0
    %146 = vmatpush.bf16.msra.mxu0 %v133
    %147 = vmatpush.bf16.msra.mxu0 %v132
    %148 = vmatmul.bf16.gmra.mxu0 %v138
    %v149 = vpop.f32.mrf.mxu0
    %v150 = vadd.f32 %v122, %v149
    %v151 = vpop.f32.mrf.mxu0
    %152 = vdwg.mxu0
    %v153 = vmax.f32 %v150, 0.0
    %v154 = vpack.c.bf16 %v153, %v153
    %v155 = vld [vmem:[#allocation8] sm:$0xf]
    %v156 = vld [vmem:[#allocation8 + $0x4] sm:$0xf]
    %v157 = vld [vmem:[#allocation8 + $0x8] sm:$0xf]
    %v158 = vld [vmem:[#allocation8 + $0xc] sm:$0xf]
    %v159 = vld [vmem:[%s6] sm:$0x1]
    %v161 = vperm.slane %v159, 0
    %v167 = vunpack.c.l.b16 %v155
    %v168 = vunpack.c.l.b16 %v156
    %v169 = vunpack.c.l.b16 %v157
    %v170 = vunpack.c.l.b16 %v158
    %v171 = vpack.c.b16 %v168, %v167
    %v172 = vpack.c.b16 %v170, %v169
    %v176 = vsel %vm136, %v154, 0
    %178 = vmatpush.bf16.msra.mxu0 0
    %179 = vmatpush.bf16.msra.mxu0 0
    %180 = vmatpush.bf16.msra.mxu0 0
    %181 = vmatpush.bf16.msra.mxu0 0
    %182 = vmatpush.bf16.msra.mxu0 0
    %183 = vmatpush.bf16.msra.mxu0 0
    %184 = vmatpush.bf16.msra.mxu0 %v172
    %185 = vmatpush.bf16.msra.mxu0 %v171
    %186 = vmatmul.bf16.gmra.mxu0 %v176
    %v187 = vpop.f32.mrf.mxu0
    %v188 = vadd.f32 %v161, %v187
    %v189 = vpop.f32.mrf.mxu0
    %190 = vdwg.mxu0
    %v191 = vpack.c.bf16 %v188, %v188
    %192 = vst [vmem:[#allocation10] sm:$0x1] %v191
    // Predicated region
    $region46: #{tpu_custom_call.1} parent=1 // pred_check
      _
    $region47: #{tpu_custom_call.1} parent=1 // pred_check_branch
      %194 = sbr.rel (0) target = $region49
    $region48: #{tpu_custom_call.1} parent=1 // pred_region
      %196 = vsyncadd [#allocation4], 0
      %s198 = sshll.u32 [#allocation10], 4
      %s199 = int_to_ptr.vmem [resolvable:$true] %s198
      %s200 = sshll.u32 %s7, 4
      %s201 = int_to_ptr.hbm [resolvable:$true] %s200
      %203 = dma.vmem_to_hbm [thread:$0]  %s199, 16, %s201, [#allocation4]
    $region49: #{tpu_custom_call.1} parent=1 // pred_fallthru
      _
    // Predicated region
    $region50: #{tpu_custom_call.1} parent=1 // pred_check
      _
    $region51: #{tpu_custom_call.1} parent=1 // pred_check_branch
      %205 = sbr.rel (0) target = $region53
    $region52: #{tpu_custom_call.1} parent=1 // pred_region
      %207 = dma.done [#allocation4], 16
    $region53: #{tpu_custom_call.1} parent=1 // pred_fallthru
      _
    %208 = vsyncpa [#allocation3], 1
    %209 = vsyncpa [#allocation6], 1
    %210 = vsyncpa [#allocation9], 1
    %211 = vsyncpa [#allocation4], 1

</llo_original>
